<compile_context>
chip_gen: v6e
topology: v6e:2x2x1
jax: 0.10.0
libtpu: 0.0.40
codegen_flags: <defaults>
</compile_context>

<pallas_src>
import jax
import jax.numpy as jnp
from jax.experimental import pallas as pl
from jax.experimental.pallas import tpu as pltpu

HIDDEN = 128
OUT_PAD = 128  # lane-dense padded output width (>= num_actions)


def dqn_kernel(x_ref, w1_ref, b1_ref, w2_ref, b2_ref,
               w21_ref, b21_ref, w3_ref, b3_ref, o_ref):
    # One batch tile per grid step; all parameters resident in VMEM.
    x = x_ref[...].astype(jnp.bfloat16)

    # Hoist bias loads (f32, broadcast once over the batch tile).
    b1 = b1_ref[...]
    b2 = b2_ref[...]
    b21 = b21_ref[...]
    b3 = b3_ref[...]

    h = jnp.dot(x, w1_ref[...], preferred_element_type=jnp.float32) + b1
    h = jnp.maximum(h, 0.0).astype(jnp.bfloat16)

    h = jnp.dot(h, w2_ref[...], preferred_element_type=jnp.float32) + b2
    h = jnp.maximum(h, 0.0).astype(jnp.bfloat16)

    h = jnp.dot(h, w21_ref[...], preferred_element_type=jnp.float32) + b21
    h = jnp.maximum(h, 0.0).astype(jnp.bfloat16)

    out = jnp.dot(h, w3_ref[...], preferred_element_type=jnp.float32) + b3
    o_ref[...] = out.astype(o_ref.dtype)


def _round_up(x, m):
    return ((x + m - 1) // m) * m


def dqn_forward(x, params, *, tm=4096):
    """x: (B, num_states) float32. params: transposed f32 weights + biases.

    Weights are stored transposed (in_features, out_features); biases (1, out).
    Returns (B, num_actions) float32 Q-values.
    """
    B, S = x.shape
    H = params["w1"].shape[1]
    num_actions = params["w3"].shape[1]

    # Batch tile: multiple of 8 (sublane), capped at `tm`. Pad the batch so it
    # divides into whole tiles; padding rows are zeros and are sliced off.
    TM = min(tm, _round_up(B, 8))
    Bp = _round_up(B, TM)
    if Bp != B:
        x = jnp.pad(x, ((0, Bp - B), (0, 0)))

    # bf16 weights for the MXU; f32 biases for the VPU adds.
    w1 = params["w1"].astype(jnp.bfloat16)
    w2 = params["w2"].astype(jnp.bfloat16)
    w21 = params["w21"].astype(jnp.bfloat16)
    b1 = params["b1"].astype(jnp.float32)
    b2 = params["b2"].astype(jnp.float32)
    b21 = params["b21"].astype(jnp.float32)

    # Zero-pad the final layer to a lane-dense, 128-wide output.
    out_pad = max(OUT_PAD, _round_up(num_actions, 128))
    w3 = jnp.pad(params["w3"].astype(jnp.bfloat16),
                 ((0, 0), (0, out_pad - num_actions)))
    b3 = jnp.pad(params["b3"].astype(jnp.float32),
                 ((0, 0), (0, out_pad - num_actions)))

    grid = (Bp // TM,)
    x_spec = pl.BlockSpec((TM, S), lambda i: (i, 0))
    w1_spec = pl.BlockSpec((S, H), lambda i: (0, 0))
    b1_spec = pl.BlockSpec((1, H), lambda i: (0, 0))
    w2_spec = pl.BlockSpec((H, H), lambda i: (0, 0))
    b2_spec = pl.BlockSpec((1, H), lambda i: (0, 0))
    w21_spec = pl.BlockSpec((H, H), lambda i: (0, 0))
    b21_spec = pl.BlockSpec((1, H), lambda i: (0, 0))
    w3_spec = pl.BlockSpec((H, out_pad), lambda i: (0, 0))
    b3_spec = pl.BlockSpec((1, out_pad), lambda i: (0, 0))
    out_spec = pl.BlockSpec((TM, out_pad), lambda i: (i, 0))

    flops_per_row = 2 * (S * H + H * H + H * H + H * out_pad)
    cost = pl.CostEstimate(
        flops=Bp * flops_per_row,
        transcendentals=0,
        bytes_accessed=(x.size * 2 + Bp * out_pad * 4
                        + (w1.size + w2.size + w21.size + w3.size) * 2
                        + (b1.size + b2.size + b21.size + b3.size) * 4),
    )

    out = pl.pallas_call(
        dqn_kernel,
        out_shape=jax.ShapeDtypeStruct((Bp, out_pad), jnp.float32),
        grid=grid,
        in_specs=[x_spec, w1_spec, b1_spec, w2_spec, b2_spec,
                  w21_spec, b21_spec, w3_spec, b3_spec],
        out_specs=out_spec,
        compiler_params=pltpu.CompilerParams(
            dimension_semantics=("parallel",),   # shard batch tiles across TCs
            vmem_limit_bytes=64 * 1024 * 1024,
        ),
        cost_estimate=cost,
    )(x, w1, b1, w2, b2, w21, b21, w3, b3)

    return out[:B, :num_actions]


def init_dqn_params(key, num_states, num_actions, hidden=HIDDEN):
    """Deterministic init mimicking nn.Linear default (uniform +/- 1/sqrt(fan_in)).

    Weights are stored transposed: (in_features, out_features).
    Biases are stored as (1, out_features).
    """
    def linear(key, fan_in, fan_out):
        kw, kb = jax.random.split(key)
        bound = 1.0 / jnp.sqrt(fan_in)
        w = jax.random.uniform(kw, (fan_in, fan_out), jnp.float32, -bound, bound)
        b = jax.random.uniform(kb, (1, fan_out), jnp.float32, -bound, bound)
        return w, b

    k1, k2, k21, k3 = jax.random.split(key, 4)
    w1, b1 = linear(k1, num_states, hidden)
    w2, b2 = linear(k2, hidden, hidden)
    w21, b21 = linear(k21, hidden, hidden)
    w3, b3 = linear(k3, hidden, num_actions)
    return dict(w1=w1, b1=b1, w2=w2, b2=b2, w21=w21, b21=b21, w3=w3, b3=b3)


if __name__ == "__main__":
    # TODO(synk): only the forward pass is a kernel; replay buffer / optimizer
    # from the original training script have no Pallas equivalent here.
    num_states = 4      # e.g. CartPole observation size
    num_actions = 2
    batch = 8

    key = jax.random.PRNGKey(0)
    kx, kp = jax.random.split(key)
    x = jax.random.normal(kx, (batch, num_states), jnp.float32)
    params = init_dqn_params(kp, num_states, num_actions)

    out = jax.block_until_ready(dqn_forward(x, params))

    # Pure-JAX f32 reference (kernel uses bf16 MXU inputs -> relaxed tolerance).
    def ref(x, p):
        h = jnp.maximum(x @ p["w1"] + p["b1"], 0.0)
        h = jnp.maximum(h @ p["w2"] + p["b2"], 0.0)
        h = jnp.maximum(h @ p["w21"] + p["b21"], 0.0)
        return h @ p["w3"] + p["b3"]

    expected = ref(x, params)
    assert out.shape == (batch, num_actions)
    assert jnp.allclose(out, expected, atol=5e-2, rtol=5e-2), (
        f"mismatch vs reference: max abs err "
        f"{float(jnp.max(jnp.abs(out - expected)))}")

    print("KERNEL_OK")
</pallas_src>

<mosaic_0001>
module attributes {stable_mosaic.version = 11 : i64} {
  func.func @dqn_kernel(%arg0: i32, %arg1: memref<8x4xf32, #tpu.memory_space<vmem>>, %arg2: memref<4x128xbf16, #tpu.memory_space<vmem>>, %arg3: memref<1x128xf32, #tpu.memory_space<vmem>>, %arg4: memref<128x128xbf16, #tpu.memory_space<vmem>>, %arg5: memref<1x128xf32, #tpu.memory_space<vmem>>, %arg6: memref<128x128xbf16, #tpu.memory_space<vmem>>, %arg7: memref<1x128xf32, #tpu.memory_space<vmem>>, %arg8: memref<128x128xbf16, #tpu.memory_space<vmem>>, %arg9: memref<1x128xf32, #tpu.memory_space<vmem>>, %arg10: memref<8x128xf32, #tpu.memory_space<vmem>>) attributes {dimension_semantics = [#tpu.dimension_semantics<parallel>], iteration_bounds = array<i64: 1>, scalar_prefetch = 0 : i64, scratch_operands = 0 : i64, tpu.core_type = #tpu.core_type<tc>, window_params = [{transform_indices = @transform_0, window_bounds = array<i64: 8, 4>}, {pipeline_mode = #tpu.pipeline_mode<synchronous>, transform_indices = @transform_1, window_bounds = array<i64: 4, 128>}, {pipeline_mode = #tpu.pipeline_mode<synchronous>, transform_indices = @transform_2, window_bounds = array<i64: 1, 128>}, {pipeline_mode = #tpu.pipeline_mode<synchronous>, transform_indices = @transform_3, window_bounds = array<i64: 128, 128>}, {pipeline_mode = #tpu.pipeline_mode<synchronous>, transform_indices = @transform_4, window_bounds = array<i64: 1, 128>}, {pipeline_mode = #tpu.pipeline_mode<synchronous>, transform_indices = @transform_5, window_bounds = array<i64: 128, 128>}, {pipeline_mode = #tpu.pipeline_mode<synchronous>, transform_indices = @transform_6, window_bounds = array<i64: 1, 128>}, {pipeline_mode = #tpu.pipeline_mode<synchronous>, transform_indices = @transform_7, window_bounds = array<i64: 128, 128>}, {pipeline_mode = #tpu.pipeline_mode<synchronous>, transform_indices = @transform_8, window_bounds = array<i64: 1, 128>}, {transform_indices = @transform_9, window_bounds = array<i64: 8, 128>}]} {
    %c0 = arith.constant 0 : index
    %c0_0 = arith.constant 0 : index
    %0 = vector.load %arg1[%c0, %c0_0] : memref<8x4xf32, #tpu.memory_space<vmem>>, vector<8x4xf32>
    %1 = arith.truncf %0 : vector<8x4xf32> to vector<8x4xbf16>
    %c0_1 = arith.constant 0 : index
    %c0_2 = arith.constant 0 : index
    %2 = vector.load %arg3[%c0_1, %c0_2] : memref<1x128xf32, #tpu.memory_space<vmem>>, vector<1x128xf32>
    %c0_3 = arith.constant 0 : index
    %c0_4 = arith.constant 0 : index
    %3 = vector.load %arg5[%c0_3, %c0_4] : memref<1x128xf32, #tpu.memory_space<vmem>>, vector<1x128xf32>
    %c0_5 = arith.constant 0 : index
    %c0_6 = arith.constant 0 : index
    %4 = vector.load %arg7[%c0_5, %c0_6] : memref<1x128xf32, #tpu.memory_space<vmem>>, vector<1x128xf32>
    %c0_7 = arith.constant 0 : index
    %c0_8 = arith.constant 0 : index
    %5 = vector.load %arg9[%c0_7, %c0_8] : memref<1x128xf32, #tpu.memory_space<vmem>>, vector<1x128xf32>
    %c0_9 = arith.constant 0 : index
    %c0_10 = arith.constant 0 : index
    %6 = vector.load %arg2[%c0_9, %c0_10] : memref<4x128xbf16, #tpu.memory_space<vmem>>, vector<4x128xbf16>
    %cst = arith.constant dense<0.000000e+00> : vector<8x128xf32>
    %7 = tpu.matmul %1, %6, %cst {dimension_numbers = #tpu.dot_dimension_numbers<[1], [0], [0], [1], [0, 0, 1, 1], [], []>} : vector<8x4xbf16>, vector<4x128xbf16>, vector<8x128xf32> -> vector<8x128xf32>
    %8 = vector.broadcast %2 : vector<1x128xf32> to vector<8x128xf32>
    %9 = arith.addf %7, %8 : vector<8x128xf32>
    %cst_11 = arith.constant 0.000000e+00 : f32
    %10 = vector.broadcast %cst_11 : f32 to vector<8x128xf32>
    %11 = arith.maximumf %9, %10 : vector<8x128xf32>
    %12 = arith.truncf %11 : vector<8x128xf32> to vector<8x128xbf16>
    %c0_12 = arith.constant 0 : index
    %c0_13 = arith.constant 0 : index
    %13 = vector.load %arg4[%c0_12, %c0_13] : memref<128x128xbf16, #tpu.memory_space<vmem>>, vector<128x128xbf16>
    %cst_14 = arith.constant dense<0.000000e+00> : vector<8x128xf32>
    %14 = tpu.matmul %12, %13, %cst_14 {dimension_numbers = #tpu.dot_dimension_numbers<[1], [0], [0], [1], [0, 0, 1, 1], [], []>} : vector<8x128xbf16>, vector<128x128xbf16>, vector<8x128xf32> -> vector<8x128xf32>
    %15 = vector.broadcast %3 : vector<1x128xf32> to vector<8x128xf32>
    %16 = arith.addf %14, %15 : vector<8x128xf32>
    %cst_15 = arith.constant 0.000000e+00 : f32
    %17 = vector.broadcast %cst_15 : f32 to vector<8x128xf32>
    %18 = arith.maximumf %16, %17 : vector<8x128xf32>
    %19 = arith.truncf %18 : vector<8x128xf32> to vector<8x128xbf16>
    %c0_16 = arith.constant 0 : index
    %c0_17 = arith.constant 0 : index
    %20 = vector.load %arg6[%c0_16, %c0_17] : memref<128x128xbf16, #tpu.memory_space<vmem>>, vector<128x128xbf16>
    %cst_18 = arith.constant dense<0.000000e+00> : vector<8x128xf32>
    %21 = tpu.matmul %19, %20, %cst_18 {dimension_numbers = #tpu.dot_dimension_numbers<[1], [0], [0], [1], [0, 0, 1, 1], [], []>} : vector<8x128xbf16>, vector<128x128xbf16>, vector<8x128xf32> -> vector<8x128xf32>
    %22 = vector.broadcast %4 : vector<1x128xf32> to vector<8x128xf32>
    %23 = arith.addf %21, %22 : vector<8x128xf32>
    %cst_19 = arith.constant 0.000000e+00 : f32
    %24 = vector.broadcast %cst_19 : f32 to vector<8x128xf32>
    %25 = arith.maximumf %23, %24 : vector<8x128xf32>
    %26 = arith.truncf %25 : vector<8x128xf32> to vector<8x128xbf16>
    %c0_20 = arith.constant 0 : index
    %c0_21 = arith.constant 0 : index
    %27 = vector.load %arg8[%c0_20, %c0_21] : memref<128x128xbf16, #tpu.memory_space<vmem>>, vector<128x128xbf16>
    %cst_22 = arith.constant dense<0.000000e+00> : vector<8x128xf32>
    %28 = tpu.matmul %26, %27, %cst_22 {dimension_numbers = #tpu.dot_dimension_numbers<[1], [0], [0], [1], [0, 0, 1, 1], [], []>} : vector<8x128xbf16>, vector<128x128xbf16>, vector<8x128xf32> -> vector<8x128xf32>
    %29 = vector.broadcast %5 : vector<1x128xf32> to vector<8x128xf32>
    %30 = arith.addf %28, %29 : vector<8x128xf32>
    %c0_23 = arith.constant 0 : index
    %c0_24 = arith.constant 0 : index
    %31 = vector.load %arg10[%c0_23, %c0_24] : memref<8x128xf32, #tpu.memory_space<vmem>>, vector<8x128xf32>
    tpu.vector_store %arg10[%c0_23, %c0_24], %30 {strides = array<i32>} : memref<8x128xf32, #tpu.memory_space<vmem>>, vector<8x128xf32>,
    return
  }
  func.func @transform_0(%arg0: i32) -> (i32, i32) {
    %c0_i32 = arith.constant 0 : i32
    %c0_i32_0 = arith.constant 0 : i32
    return %arg0, %c0_i32 : i32, i32
  }
  func.func @transform_1(%arg0: i32) -> (i32, i32) {
    %c0_i32 = arith.constant 0 : i32
    %c0_i32_0 = arith.constant 0 : i32
    %c0_i32_1 = arith.constant 0 : i32
    return %c0_i32, %c0_i32_0 : i32, i32
  }
  func.func @transform_2(%arg0: i32) -> (i32, i32) {
    %c0_i32 = arith.constant 0 : i32
    %c0_i32_0 = arith.constant 0 : i32
    %c0_i32_1 = arith.constant 0 : i32
    return %c0_i32, %c0_i32_0 : i32, i32
  }
  func.func @transform_3(%arg0: i32) -> (i32, i32) {
    %c0_i32 = arith.constant 0 : i32
    %c0_i32_0 = arith.constant 0 : i32
    %c0_i32_1 = arith.constant 0 : i32
    return %c0_i32, %c0_i32_0 : i32, i32
  }
  func.func @transform_4(%arg0: i32) -> (i32, i32) {
    %c0_i32 = arith.constant 0 : i32
    %c0_i32_0 = arith.constant 0 : i32
    %c0_i32_1 = arith.constant 0 : i32
    return %c0_i32, %c0_i32_0 : i32, i32
  }
  func.func @transform_5(%arg0: i32) -> (i32, i32) {
    %c0_i32 = arith.constant 0 : i32
    %c0_i32_0 = arith.constant 0 : i32
    %c0_i32_1 = arith.constant 0 : i32
    return %c0_i32, %c0_i32_0 : i32, i32
  }
  func.func @transform_6(%arg0: i32) -> (i32, i32) {
    %c0_i32 = arith.constant 0 : i32
    %c0_i32_0 = arith.constant 0 : i32
    %c0_i32_1 = arith.constant 0 : i32
    return %c0_i32, %c0_i32_0 : i32, i32
  }
  func.func @transform_7(%arg0: i32) -> (i32, i32) {
    %c0_i32 = arith.constant 0 : i32
    %c0_i32_0 = arith.constant 0 : i32
    %c0_i32_1 = arith.constant 0 : i32
    return %c0_i32, %c0_i32_0 : i32, i32
  }
  func.func @transform_8(%arg0: i32) -> (i32, i32) {
    %c0_i32 = arith.constant 0 : i32
    %c0_i32_0 = arith.constant 0 : i32
    %c0_i32_1 = arith.constant 0 : i32
    return %c0_i32, %c0_i32_0 : i32, i32
  }
  func.func @transform_9(%arg0: i32) -> (i32, i32) {
    %c0_i32 = arith.constant 0 : i32
    %c0_i32_0 = arith.constant 0 : i32
    return %arg0, %c0_i32 : i32, i32
  }
}

</mosaic_0001>

<llo_original>
// kernel: tpu_custom_call.1
$region0: #{tpu_custom_call.1}
  #allocation0 [shape = 'u32[]', space=smem, size = 0x4, offset = 0x4, fixed_abs, tag = 'smem constant byte address 0x4 - core index']
  #allocation1 [shape = 'u32[144,128]{1,0:T(1,128)}', space=vmem, size = 0x12000, scoped, tag = 'internal scratch']
  %s0 = inlined_call_operand.vmem [shape: f32[8,4], index: 0, kind: input, shape index: {}]
  %s1 = inlined_call_operand.vmem [shape: bf16[4,128], index: 1, kind: input, shape index: {}]
  %s2 = inlined_call_operand.vmem [shape: f32[1,128], index: 2, kind: input, shape index: {}]
  %s3 = inlined_call_operand.hbm [shape: bf16[128,128], index: 3, kind: input, shape index: {}]
  %s4 = inlined_call_operand.vmem [shape: f32[1,128], index: 4, kind: input, shape index: {}]
  %s5 = inlined_call_operand.hbm [shape: bf16[128,128], index: 5, kind: input, shape index: {}]
  %s6 = inlined_call_operand.vmem [shape: f32[1,128], index: 6, kind: input, shape index: {}]
  %s7 = inlined_call_operand.hbm [shape: bf16[128,128], index: 7, kind: input, shape index: {}]
  %s8 = inlined_call_operand.vmem [shape: f32[1,128], index: 8, kind: input, shape index: {}]
  %s9 = inlined_call_operand.hbm [shape: f32[8,128], index: 9, kind: output, shape index: {}]
  %s10 = sld [smem:[#allocation0]]
  $region58: #{tpu_custom_call.1} parent=0
    _
  %s12 = ssub.s32 1, %s10
  %s13 = scalar_select 0, %s12, %s10
  $region1: #{tpu_custom_call.1} parent=0
    #allocation2 [shape = 'u8[32768]{0}', space=vmem, size = 0x8000, scoped, tag = 'input window, operand 3, single buffered']
    #allocation3 [shape = 's32[1]{0}', space=sflag, size = 0x4, scoped, tag = 'scoped memory for tpu_custom_call.1']
    #allocation4 [shape = 's32[1]{0}', space=sflag, size = 0x4, scoped, tag = 'scoped memory for tpu_custom_call.1']
    #allocation5 [shape = 'u8[32768]{0}', space=vmem, size = 0x8000, scoped, tag = 'input window, operand 5, single buffered']
    #allocation6 [shape = 's32[1]{0}', space=sflag, size = 0x4, scoped, tag = 'scoped memory for tpu_custom_call.1']
    #allocation7 [shape = 'u8[32768]{0}', space=vmem, size = 0x8000, scoped, tag = 'input window, operand 7, single buffered']
    #allocation8 [shape = 'u8[4096]{0}', space=vmem, size = 0x1000, scoped, tag = 'output window, operand 0, single buffered']
    %14 = vsyncpa [#allocation3], 0
    %15 = vsyncpa [#allocation6], 0
    %16 = vsyncpa [#allocation4], 0
    // Predicated region
    $region2: #{tpu_custom_call.1} parent=1 // pred_check
      _
    $region3: #{tpu_custom_call.1} parent=1 // pred_check_branch
      %18 = sbr.rel (0) target = $region5
    $region4: #{tpu_custom_call.1} parent=1 // pred_region
      _
    $region5: #{tpu_custom_call.1} parent=1 // pred_fallthru
      _
    // Predicated region
    $region6: #{tpu_custom_call.1} parent=1 // pred_check
      _
    $region7: #{tpu_custom_call.1} parent=1 // pred_check_branch
      %20 = sbr.rel (0) target = $region9
    $region8: #{tpu_custom_call.1} parent=1 // pred_region
      _
    $region9: #{tpu_custom_call.1} parent=1 // pred_fallthru
      _
    // Predicated region
    $region10: #{tpu_custom_call.1} parent=1 // pred_check
      _
    $region11: #{tpu_custom_call.1} parent=1 // pred_check_branch
      %22 = sbr.rel (0) target = $region13
    $region12: #{tpu_custom_call.1} parent=1 // pred_region
      _
    $region13: #{tpu_custom_call.1} parent=1 // pred_fallthru
      _
    // Predicated region
    $region14: #{tpu_custom_call.1} parent=1 // pred_check
      _
    $region15: #{tpu_custom_call.1} parent=1 // pred_check_branch
      %24 = sbr.rel (0) target = $region17
    $region16: #{tpu_custom_call.1} parent=1 // pred_region
      %s26 = ssub.s32 1024, 1024
      %27 = vsyncadd [#allocation3], %s26
      %s28 = sshll.u32 [#allocation2], 4
      %s29 = int_to_ptr.vmem [resolvable:$true] %s28
      %34 = dma.hbm_to_vmem [thread:$0]  %s3, 1024, %s29, [#allocation3], 64, 64, 4
    $region17: #{tpu_custom_call.1} parent=1 // pred_fallthru
      _
    // Predicated region
    $region18: #{tpu_custom_call.1} parent=1 // pred_check
      _
    $region19: #{tpu_custom_call.1} parent=1 // pred_check_branch
      %36 = sbr.rel (0) target = $region21
    $region20: #{tpu_custom_call.1} parent=1 // pred_region
      _
    $region21: #{tpu_custom_call.1} parent=1 // pred_fallthru
      _
    // Predicated region
    $region22: #{tpu_custom_call.1} parent=1 // pred_check
      _
    $region23: #{tpu_custom_call.1} parent=1 // pred_check_branch
      %38 = sbr.rel (0) target = $region25
    $region24: #{tpu_custom_call.1} parent=1 // pred_region
      %s40 = ssub.s32 1024, 1024
      %41 = vsyncadd [#allocation6], %s40
      %s42 = sshll.u32 [#allocation5], 4
      %s43 = int_to_ptr.vmem [resolvable:$true] %s42
      %48 = dma.hbm_to_vmem [thread:$0]  %s5, 1024, %s43, [#allocation6], 64, 64, 4
    $region25: #{tpu_custom_call.1} parent=1 // pred_fallthru
      _
    // Predicated region
    $region26: #{tpu_custom_call.1} parent=1 // pred_check
      _
    $region27: #{tpu_custom_call.1} parent=1 // pred_check_branch
      %50 = sbr.rel (0) target = $region29
    $region28: #{tpu_custom_call.1} parent=1 // pred_region
      _
    $region29: #{tpu_custom_call.1} parent=1 // pred_fallthru
      _
    // Predicated region
    $region30: #{tpu_custom_call.1} parent=1 // pred_check
      _
    $region31: #{tpu_custom_call.1} parent=1 // pred_check_branch
      %52 = sbr.rel (0) target = $region33
    $region32: #{tpu_custom_call.1} parent=1 // pred_region
      %s54 = ssub.s32 1024, 1024
      %55 = vsyncadd [#allocation6], %s54
      %s56 = sshll.u32 [#allocation7], 4
      %s57 = int_to_ptr.vmem [resolvable:$true] %s56
      %62 = dma.hbm_to_vmem [thread:$0]  %s7, 1024, %s57, [#allocation6], 64, 64, 4
    $region33: #{tpu_custom_call.1} parent=1 // pred_fallthru
      _
    // Predicated region
    $region34: #{tpu_custom_call.1} parent=1 // pred_check
      _
    $region35: #{tpu_custom_call.1} parent=1 // pred_check_branch
      %64 = sbr.rel (0) target = $region37
    $region36: #{tpu_custom_call.1} parent=1 // pred_region
      _
    $region37: #{tpu_custom_call.1} parent=1 // pred_fallthru
      _
    // Predicated region
    $region38: #{tpu_custom_call.1} parent=1 // pred_check
      _
    $region39: #{tpu_custom_call.1} parent=1 // pred_check_branch
      %66 = sbr.rel (0) target = $region41
    $region40: #{tpu_custom_call.1} parent=1 // pred_region
      %67 = dma.done [#allocation3], 1024
    $region41: #{tpu_custom_call.1} parent=1 // pred_fallthru
      _
    // Predicated region
    $region42: #{tpu_custom_call.1} parent=1 // pred_check
      _
    $region43: #{tpu_custom_call.1} parent=1 // pred_check_branch
      %69 = sbr.rel (0) target = $region45
    $region44: #{tpu_custom_call.1} parent=1 // pred_region
      %70 = dma.done [#allocation6], 1024
    $region45: #{tpu_custom_call.1} parent=1 // pred_fallthru
      _
    // Predicated region
    $region46: #{tpu_custom_call.1} parent=1 // pred_check
      _
    $region47: #{tpu_custom_call.1} parent=1 // pred_check_branch
      %72 = sbr.rel (0) target = $region49
    $region48: #{tpu_custom_call.1} parent=1 // pred_region
      %73 = dma.done [#allocation6], 1024
    $region49: #{tpu_custom_call.1} parent=1 // pred_fallthru
      _
    %v75 = vld [vmem:[%s0] sm:$0xff]
    %v76 = vpack.c.bf16 %v75, %v75
    %v77 = vld [vmem:[%s2] sm:$0x1]
    %v78 = vld [vmem:[%s4] sm:$0x1]
    %v79 = vld [vmem:[%s6] sm:$0x1]
    %v80 = vld [vmem:[%s8] sm:$0x1]
    %v81 = vld [vmem:[%s1] sm:$0x3]
    %v83 = vlaneseq
    %v84 = vshrl.u32 %v83, 7
    %v85 = vsub.s32 0, %v84
    %v86 = vrot.slane %v77, %v85
    %vm88 = vcmask 31744
    %v90 = vsel %vm88, %v76, 0
    %vm92 = vcmask 1041408
    %v94 = vsel %vm92, %v81, 0
    %96 = vmatprep.subr.bf16.mxu0 0
    %97 = vmatpush1.bf16.msra.mxu0 0
    %98 = vmatprep.subr.bf16.mxu0 0
    %99 = vmatpush1.bf16.msra.mxu0 0
    %100 = vmatprep.subr.bf16.mxu0 0
    %101 = vmatpush1.bf16.msra.mxu0 0
    %102 = vmatprep.subr.bf16.mxu0 0
    %103 = vmatpush1.bf16.msra.mxu0 0
    %104 = vmatprep.subr.bf16.mxu0 0
    %105 = vmatpush1.bf16.msra.mxu0 0
    %106 = vmatprep.subr.bf16.mxu0 0
    %107 = vmatpush1.bf16.msra.mxu0 0
    %108 = vmatprep.subr.bf16.mxu0 0
    %109 = vmatpush1.bf16.msra.mxu0 0
    %110 = vmatprep.subr.bf16.mxu0 0
    %111 = vmatpush1.bf16.msra.mxu0 %v94
    %112 = vmatprep.subr.bf16.mxu0 0
    %113 = vmatpush2.bf16.msra.mxu0 0
    %114 = vmatprep.subr.bf16.mxu0 0
    %115 = vmatpush2.bf16.msra.mxu0 0
    %116 = vmatprep.subr.bf16.mxu0 0
    %117 = vmatpush2.bf16.msra.mxu0 0
    %118 = vmatprep.subr.bf16.mxu0 0
    %119 = vmatpush2.bf16.msra.mxu0 0
    %120 = vmatprep.subr.bf16.mxu0 0
    %121 = vmatpush2.bf16.msra.mxu0 0
    %122 = vmatprep.subr.bf16.mxu0 0
    %123 = vmatpush2.bf16.msra.mxu0 0
    %124 = vmatprep.subr.bf16.mxu0 0
    %125 = vmatpush2.bf16.msra.mxu0 0
    %126 = vmatprep.subr.bf16.mxu0 0
    %127 = vmatpush2.bf16.msra.mxu0 0
    %128 = vmatprep.mubr.bf16.mxu0 0
    %129 = vmatmul.mubr.bf16.gmra.mxu0 %v90
    %v130 = vpop.f32.mrf.mxu0
    %v131 = vadd.f32 %v86, %v130
    %v132 = vpop.f32.mrf.mxu0
    %v133 = vpop.f32.mrf.mxu0
    %v134 = vpop.f32.mrf.mxu0
    %135 = vdwg.mxu0
    %v136 = vmax.f32 %v131, 0.0
    %v137 = vpack.c.bf16 %v136, %v136
    %v138 = vld [vmem:[#allocation2] sm:$0xf]
    %v139 = vld [vmem:[#allocation2 + $0x4] sm:$0xf]
    %v140 = vld [vmem:[#allocation2 + $0x8] sm:$0xf]
    %v141 = vld [vmem:[#allocation2 + $0xc] sm:$0xf]
    %v142 = vld [vmem:[#allocation2 + $0x10] sm:$0xf]
    %v143 = vld [vmem:[#allocation2 + $0x14] sm:$0xf]
    %v144 = vld [vmem:[#allocation2 + $0x18] sm:$0xf]
    %v145 = vld [vmem:[#allocation2 + $0x1c] sm:$0xf]
    %v146 = vld [vmem:[#allocation2 + $0x20] sm:$0xf]
    %v147 = vld [vmem:[#allocation2 + $0x24] sm:$0xf]
    %v148 = vld [vmem:[#allocation2 + $0x28] sm:$0xf]
    %v149 = vld [vmem:[#allocation2 + $0x2c] sm:$0xf]
    %v150 = vld [vmem:[#allocation2 + $0x30] sm:$0xf]
    %v151 = vld [vmem:[#allocation2 + $0x34] sm:$0xf]
    %v152 = vld [vmem:[#allocation2 + $0x38] sm:$0xf]
    %v153 = vld [vmem:[#allocation2 + $0x3c] sm:$0xf]
    %v155 = vlaneseq
    %v156 = vshrl.u32 %v155, 7
    %v157 = vsub.s32 0, %v156
    %v158 = vrot.slane %v78, %v157
    %v176 = vunpack.c.l.b16 %v138
    %v177 = vunpack.c.l.b16 %v139
    %v178 = vunpack.c.l.b16 %v140
    %v179 = vunpack.c.l.b16 %v141
    %v180 = vunpack.c.l.b16 %v142
    %v181 = vunpack.c.l.b16 %v143
    %v182 = vunpack.c.l.b16 %v144
    %v183 = vunpack.c.l.b16 %v145
    %v184 = vunpack.c.l.b16 %v146
    %v185 = vunpack.c.l.b16 %v147
    %v186 = vunpack.c.l.b16 %v148
    %v187 = vunpack.c.l.b16 %v149
    %v188 = vunpack.c.l.b16 %v150
    %v189 = vunpack.c.l.b16 %v151
    %v190 = vunpack.c.l.b16 %v152
    %v191 = vunpack.c.l.b16 %v153
    %v192 = vpack.c.b16 %v177, %v176
    %v193 = vpack.c.b16 %v179, %v178
    %v194 = vpack.c.b16 %v181, %v180
    %v195 = vpack.c.b16 %v183, %v182
    %v196 = vpack.c.b16 %v185, %v184
    %v197 = vpack.c.b16 %v187, %v186
    %v198 = vpack.c.b16 %v189, %v188
    %v199 = vpack.c.b16 %v191, %v190
    %208 = vmatprep.subr.bf16.mxu0 0
    %209 = vmatpush1.bf16.msra.mxu0 %v199
    %210 = vmatprep.subr.bf16.mxu0 0
    %211 = vmatpush1.bf16.msra.mxu0 %v198
    %212 = vmatprep.subr.bf16.mxu0 0
    %213 = vmatpush1.bf16.msra.mxu0 %v197
    %214 = vmatprep.subr.bf16.mxu0 0
    %215 = vmatpush1.bf16.msra.mxu0 %v196
    %216 = vmatprep.subr.bf16.mxu0 0
    %217 = vmatpush1.bf16.msra.mxu0 %v195
    %218 = vmatprep.subr.bf16.mxu0 0
    %219 = vmatpush1.bf16.msra.mxu0 %v194
    %220 = vmatprep.subr.bf16.mxu0 0
    %221 = vmatpush1.bf16.msra.mxu0 %v193
    %222 = vmatprep.subr.bf16.mxu0 0
    %223 = vmatpush1.bf16.msra.mxu0 %v192
    %224 = vmatprep.subr.bf16.mxu0 0
    %225 = vmatpush2.bf16.msra.mxu0 0
    %226 = vmatprep.subr.bf16.mxu0 0
    %227 = vmatpush2.bf16.msra.mxu0 0
    %228 = vmatprep.subr.bf16.mxu0 0
    %229 = vmatpush2.bf16.msra.mxu0 0
    %230 = vmatprep.subr.bf16.mxu0 0
    %231 = vmatpush2.bf16.msra.mxu0 0
    %232 = vmatprep.subr.bf16.mxu0 0
    %233 = vmatpush2.bf16.msra.mxu0 0
    %234 = vmatprep.subr.bf16.mxu0 0
    %235 = vmatpush2.bf16.msra.mxu0 0
    %236 = vmatprep.subr.bf16.mxu0 0
    %237 = vmatpush2.bf16.msra.mxu0 0
    %238 = vmatprep.subr.bf16.mxu0 0
    %239 = vmatpush2.bf16.msra.mxu0 0
    %240 = vmatprep.mubr.bf16.mxu0 0
    %241 = vmatmul.mubr.bf16.gmra.mxu0 %v137
    %v242 = vpop.f32.mrf.mxu0
    %v243 = vadd.f32 %v158, %v242
    %v244 = vpop.f32.mrf.mxu0
    %v245 = vpop.f32.mrf.mxu0
    %v246 = vpop.f32.mrf.mxu0
    %247 = vdwg.mxu0
    %v248 = vmax.f32 %v243, 0.0
    %v249 = vpack.c.bf16 %v248, %v248
    %v250 = vld [vmem:[#allocation5] sm:$0xf]
    %v251 = vld [vmem:[#allocation5 + $0x4] sm:$0xf]
    %v252 = vld [vmem:[#allocation5 + $0x8] sm:$0xf]
    %v253 = vld [vmem:[#allocation5 + $0xc] sm:$0xf]
    %v254 = vld [vmem:[#allocation5 + $0x10] sm:$0xf]
    %v255 = vld [vmem:[#allocation5 + $0x14] sm:$0xf]
    %v256 = vld [vmem:[#allocation5 + $0x18] sm:$0xf]
    %v257 = vld [vmem:[#allocation5 + $0x1c] sm:$0xf]
    %v258 = vld [vmem:[#allocation5 + $0x20] sm:$0xf]
    %v259 = vld [vmem:[#allocation5 + $0x24] sm:$0xf]
    %v260 = vld [vmem:[#allocation5 + $0x28] sm:$0xf]
    %v261 = vld [vmem:[#allocation5 + $0x2c] sm:$0xf]
    %v262 = vld [vmem:[#allocation5 + $0x30] sm:$0xf]
    %v263 = vld [vmem:[#allocation5 + $0x34] sm:$0xf]
    %v264 = vld [vmem:[#allocation5 + $0x38] sm:$0xf]
    %v265 = vld [vmem:[#allocation5 + $0x3c] sm:$0xf]
    %v267 = vlaneseq
    %v268 = vshrl.u32 %v267, 7
    %v269 = vsub.s32 0, %v268
    %v270 = vrot.slane %v79, %v269
    %v288 = vunpack.c.l.b16 %v250
    %v289 = vunpack.c.l.b16 %v251
    %v290 = vunpack.c.l.b16 %v252
    %v291 = vunpack.c.l.b16 %v253
    %v292 = vunpack.c.l.b16 %v254
    %v293 = vunpack.c.l.b16 %v255
    %v294 = vunpack.c.l.b16 %v256
    %v295 = vunpack.c.l.b16 %v257
    %v296 = vunpack.c.l.b16 %v258
    %v297 = vunpack.c.l.b16 %v259
    %v298 = vunpack.c.l.b16 %v260
    %v299 = vunpack.c.l.b16 %v261
    %v300 = vunpack.c.l.b16 %v262
    %v301 = vunpack.c.l.b16 %v263
    %v302 = vunpack.c.l.b16 %v264
    %v303 = vunpack.c.l.b16 %v265
    %v304 = vpack.c.b16 %v289, %v288
    %v305 = vpack.c.b16 %v291, %v290
    %v306 = vpack.c.b16 %v293, %v292
    %v307 = vpack.c.b16 %v295, %v294
    %v308 = vpack.c.b16 %v297, %v296
    %v309 = vpack.c.b16 %v299, %v298
    %v310 = vpack.c.b16 %v301, %v300
    %v311 = vpack.c.b16 %v303, %v302
    %320 = vmatprep.subr.bf16.mxu0 0
    %321 = vmatpush1.bf16.msra.mxu0 %v311
    %322 = vmatprep.subr.bf16.mxu0 0
    %323 = vmatpush1.bf16.msra.mxu0 %v310
    %324 = vmatprep.subr.bf16.mxu0 0
    %325 = vmatpush1.bf16.msra.mxu0 %v309
    %326 = vmatprep.subr.bf16.mxu0 0
    %327 = vmatpush1.bf16.msra.mxu0 %v308
    %328 = vmatprep.subr.bf16.mxu0 0
    %329 = vmatpush1.bf16.msra.mxu0 %v307
    %330 = vmatprep.subr.bf16.mxu0 0
    %331 = vmatpush1.bf16.msra.mxu0 %v306
    %332 = vmatprep.subr.bf16.mxu0 0
    %333 = vmatpush1.bf16.msra.mxu0 %v305
    %334 = vmatprep.subr.bf16.mxu0 0
    %335 = vmatpush1.bf16.msra.mxu0 %v304
    %336 = vmatprep.subr.bf16.mxu0 0
    %337 = vmatpush2.bf16.msra.mxu0 0
    %338 = vmatprep.subr.bf16.mxu0 0
    %339 = vmatpush2.bf16.msra.mxu0 0
    %340 = vmatprep.subr.bf16.mxu0 0
    %341 = vmatpush2.bf16.msra.mxu0 0
    %342 = vmatprep.subr.bf16.mxu0 0
    %343 = vmatpush2.bf16.msra.mxu0 0
    %344 = vmatprep.subr.bf16.mxu0 0
    %345 = vmatpush2.bf16.msra.mxu0 0
    %346 = vmatprep.subr.bf16.mxu0 0
    %347 = vmatpush2.bf16.msra.mxu0 0
    %348 = vmatprep.subr.bf16.mxu0 0
    %349 = vmatpush2.bf16.msra.mxu0 0
    %350 = vmatprep.subr.bf16.mxu0 0
    %351 = vmatpush2.bf16.msra.mxu0 0
    %352 = vmatprep.mubr.bf16.mxu0 0
    %353 = vmatmul.mubr.bf16.gmra.mxu0 %v249
    %v354 = vpop.f32.mrf.mxu0
    %v355 = vadd.f32 %v270, %v354
    %v356 = vpop.f32.mrf.mxu0
    %v357 = vpop.f32.mrf.mxu0
    %v358 = vpop.f32.mrf.mxu0
    %359 = vdwg.mxu0
    %v360 = vmax.f32 %v355, 0.0
    %v361 = vpack.c.bf16 %v360, %v360
    %v362 = vld [vmem:[#allocation7] sm:$0xf]
    %v363 = vld [vmem:[#allocation7 + $0x4] sm:$0xf]
    %v364 = vld [vmem:[#allocation7 + $0x8] sm:$0xf]
    %v365 = vld [vmem:[#allocation7 + $0xc] sm:$0xf]
    %v366 = vld [vmem:[#allocation7 + $0x10] sm:$0xf]
    %v367 = vld [vmem:[#allocation7 + $0x14] sm:$0xf]
    %v368 = vld [vmem:[#allocation7 + $0x18] sm:$0xf]
    %v369 = vld [vmem:[#allocation7 + $0x1c] sm:$0xf]
    %v370 = vld [vmem:[#allocation7 + $0x20] sm:$0xf]
    %v371 = vld [vmem:[#allocation7 + $0x24] sm:$0xf]
    %v372 = vld [vmem:[#allocation7 + $0x28] sm:$0xf]
    %v373 = vld [vmem:[#allocation7 + $0x2c] sm:$0xf]
    %v374 = vld [vmem:[#allocation7 + $0x30] sm:$0xf]
    %v375 = vld [vmem:[#allocation7 + $0x34] sm:$0xf]
    %v376 = vld [vmem:[#allocation7 + $0x38] sm:$0xf]
    %v377 = vld [vmem:[#allocation7 + $0x3c] sm:$0xf]
    %v379 = vlaneseq
    %v380 = vshrl.u32 %v379, 7
    %v381 = vsub.s32 0, %v380
    %v382 = vrot.slane %v80, %v381
    %v400 = vunpack.c.l.b16 %v362
    %v401 = vunpack.c.l.b16 %v363
    %v402 = vunpack.c.l.b16 %v364
    %v403 = vunpack.c.l.b16 %v365
    %v404 = vunpack.c.l.b16 %v366
    %v405 = vunpack.c.l.b16 %v367
    %v406 = vunpack.c.l.b16 %v368
    %v407 = vunpack.c.l.b16 %v369
    %v408 = vunpack.c.l.b16 %v370
    %v409 = vunpack.c.l.b16 %v371
    %v410 = vunpack.c.l.b16 %v372
    %v411 = vunpack.c.l.b16 %v373
    %v412 = vunpack.c.l.b16 %v374
    %v413 = vunpack.c.l.b16 %v375
    %v414 = vunpack.c.l.b16 %v376
    %v415 = vunpack.c.l.b16 %v377
    %v416 = vpack.c.b16 %v401, %v400
    %v417 = vpack.c.b16 %v403, %v402
    %v418 = vpack.c.b16 %v405, %v404
    %v419 = vpack.c.b16 %v407, %v406
    %v420 = vpack.c.b16 %v409, %v408
    %v421 = vpack.c.b16 %v411, %v410
    %v422 = vpack.c.b16 %v413, %v412
    %v423 = vpack.c.b16 %v415, %v414
    %432 = vmatprep.subr.bf16.mxu0 0
    %433 = vmatpush1.bf16.msra.mxu0 %v423
    %434 = vmatprep.subr.bf16.mxu0 0
    %435 = vmatpush1.bf16.msra.mxu0 %v422
    %436 = vmatprep.subr.bf16.mxu0 0
    %437 = vmatpush1.bf16.msra.mxu0 %v421
    %438 = vmatprep.subr.bf16.mxu0 0
    %439 = vmatpush1.bf16.msra.mxu0 %v420
    %440 = vmatprep.subr.bf16.mxu0 0
    %441 = vmatpush1.bf16.msra.mxu0 %v419
    %442 = vmatprep.subr.bf16.mxu0 0
    %443 = vmatpush1.bf16.msra.mxu0 %v418
    %444 = vmatprep.subr.bf16.mxu0 0
    %445 = vmatpush1.bf16.msra.mxu0 %v417
    %446 = vmatprep.subr.bf16.mxu0 0
    %447 = vmatpush1.bf16.msra.mxu0 %v416
    %448 = vmatprep.subr.bf16.mxu0 0
    %449 = vmatpush2.bf16.msra.mxu0 0
    %450 = vmatprep.subr.bf16.mxu0 0
    %451 = vmatpush2.bf16.msra.mxu0 0
    %452 = vmatprep.subr.bf16.mxu0 0
    %453 = vmatpush2.bf16.msra.mxu0 0
    %454 = vmatprep.subr.bf16.mxu0 0
    %455 = vmatpush2.bf16.msra.mxu0 0
    %456 = vmatprep.subr.bf16.mxu0 0
    %457 = vmatpush2.bf16.msra.mxu0 0
    %458 = vmatprep.subr.bf16.mxu0 0
    %459 = vmatpush2.bf16.msra.mxu0 0
    %460 = vmatprep.subr.bf16.mxu0 0
    %461 = vmatpush2.bf16.msra.mxu0 0
    %462 = vmatprep.subr.bf16.mxu0 0
    %463 = vmatpush2.bf16.msra.mxu0 0
    %464 = vmatprep.mubr.bf16.mxu0 0
    %465 = vmatmul.mubr.bf16.gmra.mxu0 %v361
    %v466 = vpop.f32.mrf.mxu0
    %v467 = vadd.f32 %v382, %v466
    %v468 = vpop.f32.mrf.mxu0
    %v469 = vpop.f32.mrf.mxu0
    %v470 = vpop.f32.mrf.mxu0
    %471 = vdwg.mxu0
    %472 = vst [vmem:[#allocation8] sm:$0xff] %v467
    // Predicated region
    $region50: #{tpu_custom_call.1} parent=1 // pred_check
      _
    $region51: #{tpu_custom_call.1} parent=1 // pred_check_branch
      %474 = sbr.rel (0) target = $region53
    $region52: #{tpu_custom_call.1} parent=1 // pred_region
      %s476 = ssub.s32 128, 128
      %477 = vsyncadd [#allocation4], %s476
      %s479 = sshll.u32 [#allocation8], 4
      %s480 = int_to_ptr.vmem [resolvable:$true] %s479
      %482 = dma.vmem_to_hbm [thread:$0]  %s480, 128, %s9, [#allocation4]
    $region53: #{tpu_custom_call.1} parent=1 // pred_fallthru
      _
    // Predicated region
    $region54: #{tpu_custom_call.1} parent=1 // pred_check
      _
    $region55: #{tpu_custom_call.1} parent=1 // pred_check_branch
      %484 = sbr.rel (0) target = $region57
    $region56: #{tpu_custom_call.1} parent=1 // pred_region
      %485 = dma.done [#allocation4], 128
    $region57: #{tpu_custom_call.1} parent=1 // pred_fallthru
      _
    %486 = vsyncpa [#allocation3], 1
    %487 = vsyncpa [#allocation6], 1
    %488 = vsyncpa [#allocation4], 1

</llo_original>
